<compile_context>
chip_gen: v7x
topology: tpu7x:2x2x1
jax: 0.10.0
libtpu: 0.0.40
codegen_flags: <defaults>
</compile_context>

<pallas_src>
import jax
import jax.numpy as jnp
from jax import lax
from jax.experimental import pallas as pl
from jax.experimental.pallas import tpu as pltpu

_LANES = 128
_CHUNK_ROWS = 512                 # in-kernel slice; multiple of 8/16/32 sublanes
_TARGET_BLOCK_BYTES = 4 << 20     # ~4 MiB per input per grid step (review: 2-4 MiB)
_SMALL_BYTES = 1 << 20            # below this, XLA's fused elementwise+reduce wins
_VMEM_LIMIT_BYTES = 40 << 20      # 2 inputs x 2 buffers x 4 MiB + ~1 MiB temps + headroom


def _make_l1_block_kernel(block_rows: int, chunk_rows: int, rows_total: int,
                          needs_row_mask: bool):
    """Kernel emitting an (8, 128) f32 partial sum of |t - p| per grid step."""
    num_chunks = block_rows // chunk_rows
    pad_rows = (-chunk_rows) % 8   # only for tiny odd inputs (rows < 8-aligned)

    def partial_from(t, p, row0):
        diff = jnp.abs(t.astype(jnp.float32) - p.astype(jnp.float32))
        if needs_row_mask:
            # Rows past the end of the (rows_total, 128) slab exist only in the
            # boundary block (DMA pads with unspecified data) -> zero them.
            row = row0 + lax.broadcasted_iota(jnp.int32, diff.shape, 0)
            diff = jnp.where(row < rows_total, diff, jnp.float32(0.0))
        if pad_rows:
            diff = jnp.concatenate(
                [diff, jnp.zeros((pad_rows, _LANES), jnp.float32)], axis=0)
        # Layout-preserving split of the leading dim; the axis-0 sum is
        # vreg-wise adds (no cross-lane / cross-sublane reduce in the hot loop).
        return diff.reshape(-1, 8, _LANES).sum(axis=0)

    def kernel(t_ref, p_ref, o_ref):
        blk = pl.program_id(0)
        if num_chunks == 1:
            o_ref[...] = partial_from(t_ref[...], p_ref[...], blk * block_rows)
        else:
            def body(c, acc):
                r0 = pl.multiple_of(c * chunk_rows, chunk_rows)
                return acc + partial_from(
                    t_ref[pl.ds(r0, chunk_rows), :],
                    p_ref[pl.ds(r0, chunk_rows), :],
                    blk * block_rows + r0)
            o_ref[...] = lax.fori_loop(0, num_chunks, body,
                                       jnp.zeros((8, _LANES), jnp.float32))

    return kernel


def l1_loss(target, predicted, *, force_pallas: bool = False):
    assert target.shape == predicted.shape, (
        "target/predicted must match (no broadcasting in this L1Loss)")
    n_elem = int(target.size)
    out_dtype = jnp.promote_types(target.dtype, predicted.dtype)
    max_item = max(jnp.dtype(target.dtype).itemsize,
                   jnp.dtype(predicted.dtype).itemsize)
    total_bytes = n_elem * max_item
    ragged = (n_elem % _LANES) != 0

    if n_elem == 0 or ragged or (total_bytes < _SMALL_BYTES and not force_pallas):
        # TODO(synk): the ragged case (n_elem % 128 != 0) stays in plain JAX; a
        # single fused abs-diff-reduce reads each input once, which beats a
        # jnp.pad copy + kernel. A 1-D-block Pallas path with a global
        # flat-index mask could fold it in later.
        diff = jnp.abs(target.astype(jnp.float32) - predicted.astype(jnp.float32))
        return jnp.mean(diff).astype(out_dtype)

    rows = n_elem // _LANES
    t2d = target.reshape(rows, _LANES)       # free reshape for contiguous arrays
    p2d = predicted.reshape(rows, _LANES)

    # Byte-targeted block sizing (~4 MiB of the widest input per grid step),
    # rounded to a multiple of _CHUNK_ROWS=512 which is itself a multiple of the
    # packed-sublane requirement for f32/bf16/int8 (8/16/32).
    block_rows = _TARGET_BLOCK_BYTES // (_LANES * max_item)
    block_rows = max(_CHUNK_ROWS, (block_rows // _CHUNK_ROWS) * _CHUNK_ROWS)

    if rows <= block_rows:
        block_rows = rows                    # full-extent block: always legal
        if rows > _CHUNK_ROWS and rows % _CHUNK_ROWS == 0:
            chunk_rows = _CHUNK_ROWS
        else:
            chunk_rows = rows
    else:
        chunk_rows = _CHUNK_ROWS

    num_blocks = -(-rows // block_rows)
    needs_row_mask = (rows % block_rows) != 0

    kernel = _make_l1_block_kernel(block_rows, chunk_rows, rows, needs_row_mask)

    out_rows = num_blocks * 8
    in_bytes = (t2d.size * t2d.dtype.itemsize + p2d.size * p2d.dtype.itemsize)
    cost = pl.CostEstimate(
        flops=3 * n_elem,                    # sub + abs + add per element
        transcendentals=0,
        bytes_accessed=in_bytes + out_rows * _LANES * 4,
    )

    partials = pl.pallas_call(
        kernel,
        out_shape=jax.ShapeDtypeStruct((out_rows, _LANES), jnp.float32),
        grid_spec=pltpu.PrefetchScalarGridSpec(
            num_scalar_prefetch=0,
            grid=(num_blocks,),
            in_specs=[
                pl.BlockSpec((block_rows, _LANES), lambda i: (i, 0)),
                pl.BlockSpec((block_rows, _LANES), lambda i: (i, 0)),
            ],
            out_specs=pl.BlockSpec((8, _LANES), lambda i: (i, 0)),
        ),
        compiler_params=pltpu.CompilerParams(
            # Independent per-block partials -> megacore-shardable on v7x;
            # measured no-op on single-TC v5e/v6e.
            dimension_semantics=("parallel",),
            vmem_limit_bytes=_VMEM_LIMIT_BYTES,
        ),
        cost_estimate=cost,
    )(t2d, p2d)

    # Tiny final reduce (num_blocks * 8 * 128 f32) + mean in plain JAX.
    total = jnp.sum(partials, dtype=jnp.float32)
    return (total / jnp.float32(n_elem)).astype(out_dtype)


if __name__ == "__main__":
    key = jax.random.PRNGKey(0)
    k1, k2, k3, k4 = jax.random.split(key, 4)

    # Small NCHW shape from the module spec — forced through the Pallas kernel.
    target = jax.random.normal(k1, (2, 4, 16, 16), dtype=jnp.float32)
    predicted = jax.random.normal(k2, (2, 4, 16, 16), dtype=jnp.float32)
    out = jax.block_until_ready(l1_loss(target, predicted, force_pallas=True))
    ref = jnp.mean(jnp.abs(target - predicted))
    assert jnp.allclose(out, ref, rtol=1e-5, atol=1e-6), (out, ref)

    # Larger input: multi-block grid with a partial last block (exercises the
    # in-kernel row mask and the chunked accumulation loop).
    t_big = jax.random.normal(k3, (2, 8, 257, 256), dtype=jnp.float32)
    p_big = jax.random.normal(k4, (2, 8, 257, 256), dtype=jnp.float32)
    out_big = jax.block_until_ready(l1_loss(t_big, p_big))
    ref_big = jnp.mean(jnp.abs(t_big - p_big))
    assert jnp.allclose(out_big, ref_big, rtol=1e-4, atol=1e-5), (out_big, ref_big)

    print("KERNEL_OK")
</pallas_src>

<mosaic_0001>
module attributes {stable_mosaic.version = 11 : i64} {
  func.func @kernel(%arg0: i32, %arg1: memref<16x128xf32, #tpu.memory_space<vmem>>, %arg2: memref<16x128xf32, #tpu.memory_space<vmem>>, %arg3: memref<8x128xf32, #tpu.memory_space<vmem>>) attributes {dimension_semantics = [#tpu.dimension_semantics<parallel>], iteration_bounds = array<i64: 1>, scalar_prefetch = 0 : i64, scratch_operands = 0 : i64, tpu.core_type = #tpu.core_type<tc>, window_params = [{transform_indices = @transform_0, window_bounds = array<i64: 16, 128>}, {transform_indices = @transform_1, window_bounds = array<i64: 16, 128>}, {transform_indices = @transform_2, window_bounds = array<i64: 8, 128>}]} {
    %c0 = arith.constant 0 : index
    %c0_0 = arith.constant 0 : index
    %0 = vector.load %arg1[%c0, %c0_0] : memref<16x128xf32, #tpu.memory_space<vmem>>, vector<16x128xf32>
    %c0_1 = arith.constant 0 : index
    %c0_2 = arith.constant 0 : index
    %1 = vector.load %arg2[%c0_1, %c0_2] : memref<16x128xf32, #tpu.memory_space<vmem>>, vector<16x128xf32>
    %2 = arith.subf %0, %1 : vector<16x128xf32>
    %3 = math.absf %2 : vector<16x128xf32>
    %4 = vector.shape_cast %3 : vector<16x128xf32> to vector<2x8x128xf32>
    %cst = arith.constant dense<0.000000e+00> : vector<8x128xf32>
    %5 = vector.multi_reduction <add>, %4, %cst [0] : vector<2x8x128xf32> to vector<8x128xf32>
    %c0_3 = arith.constant 0 : index
    %c0_4 = arith.constant 0 : index
    %6 = vector.load %arg3[%c0_3, %c0_4] : memref<8x128xf32, #tpu.memory_space<vmem>>, vector<8x128xf32>
    tpu.vector_store %arg3[%c0_3, %c0_4], %5 {strides = array<i32>} : memref<8x128xf32, #tpu.memory_space<vmem>>, vector<8x128xf32>,
    return
  }
  func.func @transform_0(%arg0: i32) -> (i32, i32) {
    %c0_i32 = arith.constant 0 : i32
    %c0_i32_0 = arith.constant 0 : i32
    return %arg0, %c0_i32 : i32, i32
  }
  func.func @transform_1(%arg0: i32) -> (i32, i32) {
    %c0_i32 = arith.constant 0 : i32
    %c0_i32_0 = arith.constant 0 : i32
    return %arg0, %c0_i32 : i32, i32
  }
  func.func @transform_2(%arg0: i32) -> (i32, i32) {
    %c0_i32 = arith.constant 0 : i32
    %c0_i32_0 = arith.constant 0 : i32
    return %arg0, %c0_i32 : i32, i32
  }
}

</mosaic_0001>

<llo_original>
// kernel: tpu_custom_call.1
$region0: #{tpu_custom_call.1}
  #allocation0 [shape = 'u32[]', space=smem, size = 0x4, offset = 0x4, fixed_abs, tag = 'smem constant byte address 0x4 - core index']
  #allocation1 [shape = 'u32[144,128]{1,0:T(1,128)}', space=vmem, size = 0x12000, scoped, tag = 'internal scratch']
  %s0 = inlined_call_operand.hbm [shape: f32[16,128], index: 0, kind: input, shape index: {}]
  %s1 = inlined_call_operand.hbm [shape: f32[16,128], index: 1, kind: input, shape index: {}]
  %s2 = inlined_call_operand.hbm [shape: f32[8,128], index: 2, kind: output, shape index: {}]
  %s3 = sld [smem:[#allocation0]]
  $region26: #{tpu_custom_call.1} parent=0
    _
  %s5 = ssub.s32 1, %s3
  %s6 = scalar_select 0, %s5, %s3
  $region1: #{tpu_custom_call.1} parent=0
    #allocation2 [shape = 'u8[8192]{0}', space=vmem, size = 0x2000, scoped, tag = 'input window, operand 0, single buffered']
    #allocation3 [shape = 's32[1]{0}', space=sflag, size = 0x4, scoped, tag = 'scoped memory for tpu_custom_call.1']
    #allocation4 [shape = 's32[1]{0}', space=sflag, size = 0x4, scoped, tag = 'scoped memory for tpu_custom_call.1']
    #allocation5 [shape = 'u8[8192]{0}', space=vmem, size = 0x2000, scoped, tag = 'input window, operand 1, single buffered']
    #allocation6 [shape = 's32[1]{0}', space=sflag, size = 0x4, scoped, tag = 'scoped memory for tpu_custom_call.1']
    #allocation7 [shape = 'u8[4096]{0}', space=vmem, size = 0x1000, scoped, tag = 'output window, operand 0, single buffered']
    %7 = vsyncpa [#allocation3], 0
    %8 = vsyncpa [#allocation6], 0
    %9 = vsyncpa [#allocation4], 0
    // Predicated region
    $region2: #{tpu_custom_call.1} parent=1 // pred_check
      _
    $region3: #{tpu_custom_call.1} parent=1 // pred_check_branch
      %11 = sbr.rel (0) target = $region5
    $region4: #{tpu_custom_call.1} parent=1 // pred_region
      %s13 = ssub.s32 256, 256
      %14 = vsyncadd [#allocation3], %s13
      %s15 = sshll.u32 [#allocation2], 4
      %s16 = int_to_ptr.vmem [resolvable:$true] %s15
      %21 = dma.hbm_to_vmem [thread:$0]  %s0, 256, %s16, [#allocation3], 128, 128, 8
    $region5: #{tpu_custom_call.1} parent=1 // pred_fallthru
      _
    // Predicated region
    $region6: #{tpu_custom_call.1} parent=1 // pred_check
      _
    $region7: #{tpu_custom_call.1} parent=1 // pred_check_branch
      %23 = sbr.rel (0) target = $region9
    $region8: #{tpu_custom_call.1} parent=1 // pred_region
      %s25 = ssub.s32 256, 256
      %26 = vsyncadd [#allocation6], %s25
      %s27 = sshll.u32 [#allocation5], 4
      %s28 = int_to_ptr.vmem [resolvable:$true] %s27
      %33 = dma.hbm_to_vmem [thread:$0]  %s1, 256, %s28, [#allocation6], 128, 128, 8
    $region9: #{tpu_custom_call.1} parent=1 // pred_fallthru
      _
    // Predicated region
    $region10: #{tpu_custom_call.1} parent=1 // pred_check
      _
    $region11: #{tpu_custom_call.1} parent=1 // pred_check_branch
      %35 = sbr.rel (0) target = $region13
    $region12: #{tpu_custom_call.1} parent=1 // pred_region
      %36 = dma.done [#allocation3], 256
    $region13: #{tpu_custom_call.1} parent=1 // pred_fallthru
      _
    // Predicated region
    $region14: #{tpu_custom_call.1} parent=1 // pred_check
      _
    $region15: #{tpu_custom_call.1} parent=1 // pred_check_branch
      %38 = sbr.rel (0) target = $region17
    $region16: #{tpu_custom_call.1} parent=1 // pred_region
      %39 = dma.done [#allocation6], 256
    $region17: #{tpu_custom_call.1} parent=1 // pred_fallthru
      _
    %v40 = vld [vmem:[#allocation2] sm:$0xff]
    %v41 = vld [vmem:[#allocation2 + $0x8] sm:$0xff]
    %v42 = vld [vmem:[#allocation5] sm:$0xff]
    %v43 = vld [vmem:[#allocation5 + $0x8] sm:$0xff]
    %v44 = vsub.f32 %v40, %v42
    %v45 = vsub.f32 %v41, %v43
    %v46 = vand.u32 2147483647, %v44
    %v47 = vand.u32 2147483647, %v45
    %v48 = vadd.f32 %v46, %v47
    %49 = vst [vmem:[#allocation7] sm:$0xff] %v48
    // Predicated region
    $region18: #{tpu_custom_call.1} parent=1 // pred_check
      _
    $region19: #{tpu_custom_call.1} parent=1 // pred_check_branch
      %51 = sbr.rel (0) target = $region21
    $region20: #{tpu_custom_call.1} parent=1 // pred_region
      %s53 = ssub.s32 128, 128
      %54 = vsyncadd [#allocation4], %s53
      %s56 = sshll.u32 [#allocation7], 4
      %s57 = int_to_ptr.vmem [resolvable:$true] %s56
      %59 = dma.vmem_to_hbm [thread:$0]  %s57, 128, %s2, [#allocation4]
    $region21: #{tpu_custom_call.1} parent=1 // pred_fallthru
      _
    // Predicated region
    $region22: #{tpu_custom_call.1} parent=1 // pred_check
      _
    $region23: #{tpu_custom_call.1} parent=1 // pred_check_branch
      %61 = sbr.rel (0) target = $region25
    $region24: #{tpu_custom_call.1} parent=1 // pred_region
      %62 = dma.done [#allocation4], 128
    $region25: #{tpu_custom_call.1} parent=1 // pred_fallthru
      _
    %63 = vsyncpa [#allocation3], 1
    %64 = vsyncpa [#allocation6], 1
    %65 = vsyncpa [#allocation4], 1

</llo_original>
